<compile_context>
chip_gen: v7x
topology: tpu7x:2x2x1
jax: 0.10.0
libtpu: 0.0.40
codegen_flags: <defaults>
</compile_context>

<pallas_src>
import functools

import jax
import jax.numpy as jnp
from jax.experimental import pallas as pl
from jax.experimental.pallas import tpu as pltpu


OUT_ROWS = 8           # fc4 output rows padded 5 -> 8 (sublane granularity)
LANES = 128            # batch granularity in the batch-in-lanes layout
DEFAULT_TILE_B = 8192  # ~4-5 MiB live VMEM/step; fits v5e default scoped VMEM


def _round_up(x, m):
    return ((x + m - 1) // m) * m


def _leaky_relu(x, slope=0.1):
    return jnp.where(x > 0, x, slope * x)


def bb84nn_kernel(xt_ref, w1_ref, w2_ref, w3_ref, w4_ref, b_ref, o_ref):
    """One batch tile: x^T (4, TB) -> out^T (8, TB) (rows 5..7 are zero)."""
    xt = xt_ref[...].astype(jnp.bfloat16)                          # (4, TB)

    # biases: one column per layer in a single resident (64, 4) f32 ref
    b1 = b_ref[:, 0:1]                                             # (64, 1)
    b2 = b_ref[0:32, 1:2]                                          # (32, 1)
    b3 = b_ref[0:16, 2:3]                                          # (16, 1)
    b4 = b_ref[0:OUT_ROWS, 3:4]                                    # (8, 1)

    # fc1 (+ folded bn1) + leaky_relu ; dropout -> identity at inference
    h = jnp.dot(w1_ref[...], xt, preferred_element_type=jnp.float32) + b1
    h = _leaky_relu(h)                                             # (64, TB)

    # fc2 (+ folded bn2) + leaky_relu
    h = jnp.dot(w2_ref[...], h.astype(jnp.bfloat16),
                preferred_element_type=jnp.float32) + b2
    h = _leaky_relu(h)                                             # (32, TB)

    # fc3 (+ folded bn3) + leaky_relu
    h = jnp.dot(w3_ref[...], h.astype(jnp.bfloat16),
                preferred_element_type=jnp.float32) + b3
    h = _leaky_relu(h)                                             # (16, TB)

    # fc4 (rows padded to 8, no activation)
    out = jnp.dot(w4_ref[...], h.astype(jnp.bfloat16),
                  preferred_element_type=jnp.float32) + b4         # (8, TB)
    o_ref[...] = out.astype(o_ref.dtype)


def fold_params(params):
    """Fold BN affine into the linear layers, transpose to (dout, din), pad
    fc4 to 8 rows, pack biases, cast weights to bf16.

    Call ONCE per parameter set (NOT inside the per-call forward)."""
    def fold(w, b, s, t):
        # bn(fc(x)) = (x@W + b) * s + t = x @ (W*s) + (b*s + t)
        return w * s, (b * s + t).reshape(-1)

    w1, b1 = fold(params["w1"], params["b1"], params["s1"], params["t1"])
    w2, b2 = fold(params["w2"], params["b2"], params["s2"], params["t2"])
    w3, b3 = fold(params["w3"], params["b3"], params["s3"], params["t3"])
    w4 = params["w4"]
    b4 = params["b4"].reshape(-1)

    w4t = jnp.zeros((OUT_ROWS, 16), jnp.float32).at[:5, :].set(w4.T)

    b_all = jnp.zeros((64, 4), jnp.float32)
    b_all = b_all.at[:, 0].set(b1)
    b_all = b_all.at[:32, 1].set(b2)
    b_all = b_all.at[:16, 2].set(b3)
    b_all = b_all.at[:5, 3].set(b4)

    return {
        "w1t": w1.T.astype(jnp.bfloat16),   # (64, 4)
        "w2t": w2.T.astype(jnp.bfloat16),   # (32, 64)
        "w3t": w3.T.astype(jnp.bfloat16),   # (16, 32)
        "w4t": w4t.astype(jnp.bfloat16),    # (8, 16)
        "b_all": b_all,                     # (64, 4) f32
    }


def _compute_tiling(B, tile_b):
    Bp = _round_up(max(B, 1), LANES)
    TB = min(tile_b, Bp)
    # v7x: guarantee >= 2 grid steps (one per TensorCore) when the padded
    # batch is wider than a single lane group.
    if Bp > LANES:
        TB = min(TB, _round_up(pl.cdiv(Bp, 2), LANES))
    TB = max(_round_up(TB, LANES), LANES)
    Bp = _round_up(Bp, TB)
    return Bp, TB


@functools.partial(jax.jit, static_argnames=("tile_b",))
def bb84nn_forward_t(xt, folded, *, tile_b=DEFAULT_TILE_B):
    """Core launcher.  xt: (4, B) f32 (features-major).

    Returns (8, Bp) f32 with Bp = B rounded up to the tile size; rows 0..4
    and columns 0..B-1 are valid.  No post-kernel copies — latency-critical
    consumers should use this directly."""
    B = xt.shape[1]
    Bp, TB = _compute_tiling(B, tile_b)
    if Bp != B:
        xt = jnp.pad(xt, ((0, 0), (0, Bp - B)))

    grid = (Bp // TB,)
    in_specs = [
        pl.BlockSpec((4, TB), lambda i: (0, i)),          # x^T: streamed
        pl.BlockSpec((64, 4), lambda i: (0, 0)),          # weights: resident
        pl.BlockSpec((32, 64), lambda i: (0, 0)),
        pl.BlockSpec((16, 32), lambda i: (0, 0)),
        pl.BlockSpec((OUT_ROWS, 16), lambda i: (0, 0)),
        pl.BlockSpec((64, 4), lambda i: (0, 0)),          # packed biases
    ]
    out_specs = pl.BlockSpec((OUT_ROWS, TB), lambda i: (0, i))

    weight_bytes = 2 * (64 * 4 + 32 * 64 + 16 * 32 + OUT_ROWS * 16) + 4 * 64 * 4
    cost = pl.CostEstimate(
        flops=2 * Bp * (4 * 64 + 64 * 32 + 32 * 16 + 16 * OUT_ROWS),
        transcendentals=0,
        bytes_accessed=Bp * 4 * (4 + OUT_ROWS) + weight_bytes,
    )

    return pl.pallas_call(
        bb84nn_kernel,
        out_shape=jax.ShapeDtypeStruct((OUT_ROWS, Bp), jnp.float32),
        grid=grid,
        in_specs=in_specs,
        out_specs=out_specs,
        compiler_params=pltpu.CompilerParams(
            # batch tiles are independent -> shard across TensorCores (v7x)
            dimension_semantics=("parallel",),
        ),
        cost_estimate=cost,
    )(xt, folded["w1t"], folded["w2t"], folded["w3t"], folded["w4t"],
      folded["b_all"])


@functools.partial(jax.jit, static_argnames=("tile_b",))
def bb84nn_forward(x, folded, *, tile_b=DEFAULT_TILE_B):
    """Module-shaped convenience wrapper: x (B, 4) f32 -> (B, 5) f32.

    The transpose-in / slice-out are tiny XLA ops (16 B / 20 B per row);
    bandwidth-critical callers should feed x^T and consume the (8, Bp)
    output of bb84nn_forward_t directly."""
    B = x.shape[0]
    out_t = bb84nn_forward_t(x.T, folded, tile_b=tile_b)
    return out_t[:5, :B].T


def make_params(key):
    dims = [(4, 64), (64, 32), (32, 16), (16, 5)]
    params = {}
    keys = jax.random.split(key, 16)
    ki = 0
    for li, (din, dout) in enumerate(dims, start=1):
        bound = 1.0 / jnp.sqrt(din)
        w = jax.random.uniform(keys[ki], (din, dout), jnp.float32, -bound, bound); ki += 1
        b = jax.random.uniform(keys[ki], (1, dout), jnp.float32, -bound, bound); ki += 1
        params[f"w{li}"] = w
        params[f"b{li}"] = b
        if li < 4:  # BatchNorm1d after fc1/fc2/fc3 (inference: running stats)
            gamma = 1.0 + 0.01 * jax.random.normal(keys[ki], (1, dout), jnp.float32); ki += 1
            beta = 0.01 * jax.random.normal(keys[ki], (1, dout), jnp.float32); ki += 1
            running_mean = jnp.zeros((1, dout), jnp.float32)
            running_var = jnp.ones((1, dout), jnp.float32)
            eps = 1e-5
            scale = gamma / jnp.sqrt(running_var + eps)
            shift = beta - running_mean * scale
            params[f"s{li}"] = scale
            params[f"t{li}"] = shift
    return params


def reference_forward(x, params):
    """Plain-JAX f32 reference mirroring the PyTorch forward (eval mode)."""
    h = x @ params["w1"] + params["b1"]
    h = h * params["s1"] + params["t1"]
    h = jnp.where(h > 0, h, 0.1 * h)
    h = h @ params["w2"] + params["b2"]
    h = h * params["s2"] + params["t2"]
    h = jnp.where(h > 0, h, 0.1 * h)
    h = h @ params["w3"] + params["b3"]
    h = h * params["s3"] + params["t3"]
    h = jnp.where(h > 0, h, 0.1 * h)
    return h @ params["w4"] + params["b4"]


if __name__ == "__main__":
    key = jax.random.PRNGKey(0)
    kx, kp = jax.random.split(key)
    B = 8
    x = jax.random.normal(kx, (B, 4), jnp.float32)
    params = make_params(kp)

    folded = fold_params(params)          # fold/pad/pack once, outside forward

    out = bb84nn_forward(x, folded)
    out = jax.block_until_ready(out)

    ref = reference_forward(x, params)
    assert out.shape == (B, 5)
    # bf16 matmul operands with f32 accumulation: allow ~1e-2 abs/rel error
    max_err = float(jnp.max(jnp.abs(out - ref)))
    assert jnp.allclose(out, ref, atol=2e-2, rtol=2e-2), (
        f"mismatch vs reference: max|diff|={max_err}")
    print("KERNEL_OK")
</pallas_src>

<mosaic_0001>
module attributes {stable_mosaic.version = 11 : i64} {
  func.func @bb84nn_kernel(%arg0: i32, %arg1: memref<4x128xf32, #tpu.memory_space<vmem>>, %arg2: memref<64x4xbf16, #tpu.memory_space<vmem>>, %arg3: memref<32x64xbf16, #tpu.memory_space<vmem>>, %arg4: memref<16x32xbf16, #tpu.memory_space<vmem>>, %arg5: memref<8x16xbf16, #tpu.memory_space<vmem>>, %arg6: memref<64x4xf32, #tpu.memory_space<vmem>>, %arg7: memref<8x128xf32, #tpu.memory_space<vmem>>) attributes {dimension_semantics = [#tpu.dimension_semantics<parallel>], iteration_bounds = array<i64: 1>, scalar_prefetch = 0 : i64, scratch_operands = 0 : i64, tpu.core_type = #tpu.core_type<tc>, window_params = [{transform_indices = @transform_0, window_bounds = array<i64: 4, 128>}, {pipeline_mode = #tpu.pipeline_mode<synchronous>, transform_indices = @transform_1, window_bounds = array<i64: 64, 4>}, {pipeline_mode = #tpu.pipeline_mode<synchronous>, transform_indices = @transform_2, window_bounds = array<i64: 32, 64>}, {pipeline_mode = #tpu.pipeline_mode<synchronous>, transform_indices = @transform_3, window_bounds = array<i64: 16, 32>}, {pipeline_mode = #tpu.pipeline_mode<synchronous>, transform_indices = @transform_4, window_bounds = array<i64: 8, 16>}, {pipeline_mode = #tpu.pipeline_mode<synchronous>, transform_indices = @transform_5, window_bounds = array<i64: 64, 4>}, {transform_indices = @transform_6, window_bounds = array<i64: 8, 128>}]} {
    %c0 = arith.constant 0 : index
    %c0_0 = arith.constant 0 : index
    %0 = vector.load %arg1[%c0, %c0_0] : memref<4x128xf32, #tpu.memory_space<vmem>>, vector<4x128xf32>
    %1 = arith.truncf %0 : vector<4x128xf32> to vector<4x128xbf16>
    %c0_1 = arith.constant 0 : index
    %c0_2 = arith.constant 0 : index
    %2 = vector.load %arg6[%c0_1, %c0_2] : memref<64x4xf32, #tpu.memory_space<vmem>>, vector<64x1xf32>
    %c0_3 = arith.constant 0 : index
    %c1 = arith.constant 1 : index
    %3 = vector.load %arg6[%c0_3, %c1] : memref<64x4xf32, #tpu.memory_space<vmem>>, vector<32x1xf32>
    %c0_4 = arith.constant 0 : index
    %c2 = arith.constant 2 : index
    %4 = vector.load %arg6[%c0_4, %c2] : memref<64x4xf32, #tpu.memory_space<vmem>>, vector<16x1xf32>
    %c0_5 = arith.constant 0 : index
    %c3 = arith.constant 3 : index
    %5 = vector.load %arg6[%c0_5, %c3] : memref<64x4xf32, #tpu.memory_space<vmem>>, vector<8x1xf32>
    %c0_6 = arith.constant 0 : index
    %c0_7 = arith.constant 0 : index
    %6 = vector.load %arg2[%c0_6, %c0_7] : memref<64x4xbf16, #tpu.memory_space<vmem>>, vector<64x4xbf16>
    %cst = arith.constant dense<0.000000e+00> : vector<64x128xf32>
    %7 = tpu.matmul %6, %1, %cst {dimension_numbers = #tpu.dot_dimension_numbers<[1], [0], [0], [1], [0, 0, 1, 1], [], []>} : vector<64x4xbf16>, vector<4x128xbf16>, vector<64x128xf32> -> vector<64x128xf32>
    %8 = vector.broadcast %2 : vector<64x1xf32> to vector<64x128xf32>
    %9 = arith.addf %7, %8 : vector<64x128xf32>
    %cst_8 = arith.constant 0.000000e+00 : f32
    %10 = vector.broadcast %cst_8 : f32 to vector<64x128xf32>
    %11 = arith.cmpf ogt, %9, %10 : vector<64x128xf32>
    %cst_9 = arith.constant 1.000000e-01 : f32
    %12 = vector.broadcast %cst_9 : f32 to vector<64x128xf32>
    %13 = arith.mulf %12, %9 : vector<64x128xf32>
    %14 = arith.select %11, %9, %13 : vector<64x128xi1>, vector<64x128xf32>
    %c0_10 = arith.constant 0 : index
    %c0_11 = arith.constant 0 : index
    %15 = vector.load %arg3[%c0_10, %c0_11] : memref<32x64xbf16, #tpu.memory_space<vmem>>, vector<32x64xbf16>
    %16 = arith.truncf %14 : vector<64x128xf32> to vector<64x128xbf16>
    %cst_12 = arith.constant dense<0.000000e+00> : vector<32x128xf32>
    %17 = tpu.matmul %15, %16, %cst_12 {dimension_numbers = #tpu.dot_dimension_numbers<[1], [0], [0], [1], [0, 0, 1, 1], [], []>} : vector<32x64xbf16>, vector<64x128xbf16>, vector<32x128xf32> -> vector<32x128xf32>
    %18 = vector.broadcast %3 : vector<32x1xf32> to vector<32x128xf32>
    %19 = arith.addf %17, %18 : vector<32x128xf32>
    %cst_13 = arith.constant 0.000000e+00 : f32
    %20 = vector.broadcast %cst_13 : f32 to vector<32x128xf32>
    %21 = arith.cmpf ogt, %19, %20 : vector<32x128xf32>
    %cst_14 = arith.constant 1.000000e-01 : f32
    %22 = vector.broadcast %cst_14 : f32 to vector<32x128xf32>
    %23 = arith.mulf %22, %19 : vector<32x128xf32>
    %24 = arith.select %21, %19, %23 : vector<32x128xi1>, vector<32x128xf32>
    %c0_15 = arith.constant 0 : index
    %c0_16 = arith.constant 0 : index
    %25 = vector.load %arg4[%c0_15, %c0_16] : memref<16x32xbf16, #tpu.memory_space<vmem>>, vector<16x32xbf16>
    %26 = arith.truncf %24 : vector<32x128xf32> to vector<32x128xbf16>
    %cst_17 = arith.constant dense<0.000000e+00> : vector<16x128xf32>
    %27 = tpu.matmul %25, %26, %cst_17 {dimension_numbers = #tpu.dot_dimension_numbers<[1], [0], [0], [1], [0, 0, 1, 1], [], []>} : vector<16x32xbf16>, vector<32x128xbf16>, vector<16x128xf32> -> vector<16x128xf32>
    %28 = vector.broadcast %4 : vector<16x1xf32> to vector<16x128xf32>
    %29 = arith.addf %27, %28 : vector<16x128xf32>
    %cst_18 = arith.constant 0.000000e+00 : f32
    %30 = vector.broadcast %cst_18 : f32 to vector<16x128xf32>
    %31 = arith.cmpf ogt, %29, %30 : vector<16x128xf32>
    %cst_19 = arith.constant 1.000000e-01 : f32
    %32 = vector.broadcast %cst_19 : f32 to vector<16x128xf32>
    %33 = arith.mulf %32, %29 : vector<16x128xf32>
    %34 = arith.select %31, %29, %33 : vector<16x128xi1>, vector<16x128xf32>
    %c0_20 = arith.constant 0 : index
    %c0_21 = arith.constant 0 : index
    %35 = vector.load %arg5[%c0_20, %c0_21] : memref<8x16xbf16, #tpu.memory_space<vmem>>, vector<8x16xbf16>
    %36 = arith.truncf %34 : vector<16x128xf32> to vector<16x128xbf16>
    %cst_22 = arith.constant dense<0.000000e+00> : vector<8x128xf32>
    %37 = tpu.matmul %35, %36, %cst_22 {dimension_numbers = #tpu.dot_dimension_numbers<[1], [0], [0], [1], [0, 0, 1, 1], [], []>} : vector<8x16xbf16>, vector<16x128xbf16>, vector<8x128xf32> -> vector<8x128xf32>
    %38 = vector.broadcast %5 : vector<8x1xf32> to vector<8x128xf32>
    %39 = arith.addf %37, %38 : vector<8x128xf32>
    %c0_23 = arith.constant 0 : index
    %c0_24 = arith.constant 0 : index
    %40 = vector.load %arg7[%c0_23, %c0_24] : memref<8x128xf32, #tpu.memory_space<vmem>>, vector<8x128xf32>
    tpu.vector_store %arg7[%c0_23, %c0_24], %39 {strides = array<i32>} : memref<8x128xf32, #tpu.memory_space<vmem>>, vector<8x128xf32>,
    return
  }
  func.func @transform_0(%arg0: i32) -> (i32, i32) {
    %c0_i32 = arith.constant 0 : i32
    %c0_i32_0 = arith.constant 0 : i32
    return %c0_i32, %arg0 : i32, i32
  }
  func.func @transform_1(%arg0: i32) -> (i32, i32) {
    %c0_i32 = arith.constant 0 : i32
    %c0_i32_0 = arith.constant 0 : i32
    %c0_i32_1 = arith.constant 0 : i32
    return %c0_i32, %c0_i32_0 : i32, i32
  }
  func.func @transform_2(%arg0: i32) -> (i32, i32) {
    %c0_i32 = arith.constant 0 : i32
    %c0_i32_0 = arith.constant 0 : i32
    %c0_i32_1 = arith.constant 0 : i32
    return %c0_i32, %c0_i32_0 : i32, i32
  }
  func.func @transform_3(%arg0: i32) -> (i32, i32) {
    %c0_i32 = arith.constant 0 : i32
    %c0_i32_0 = arith.constant 0 : i32
    %c0_i32_1 = arith.constant 0 : i32
    return %c0_i32, %c0_i32_0 : i32, i32
  }
  func.func @transform_4(%arg0: i32) -> (i32, i32) {
    %c0_i32 = arith.constant 0 : i32
    %c0_i32_0 = arith.constant 0 : i32
    %c0_i32_1 = arith.constant 0 : i32
    return %c0_i32, %c0_i32_0 : i32, i32
  }
  func.func @transform_5(%arg0: i32) -> (i32, i32) {
    %c0_i32 = arith.constant 0 : i32
    %c0_i32_0 = arith.constant 0 : i32
    %c0_i32_1 = arith.constant 0 : i32
    return %c0_i32, %c0_i32_0 : i32, i32
  }
  func.func @transform_6(%arg0: i32) -> (i32, i32) {
    %c0_i32 = arith.constant 0 : i32
    %c0_i32_0 = arith.constant 0 : i32
    return %c0_i32, %arg0 : i32, i32
  }
}

</mosaic_0001>

<llo_original>
// kernel: bb84nn_forward_t.1
$region0: #{bb84nn_forward_t.1}
  #allocation0 [shape = 'u32[]', space=smem, size = 0x4, offset = 0x4, fixed_abs, tag = 'smem constant byte address 0x4 - core index']
  #allocation1 [shape = 'u32[144,128]{1,0:T(1,128)}', space=vmem, size = 0x12000, scoped, tag = 'internal scratch']
  %s0 = inlined_call_operand.vmem [shape: f32[4,128], index: 0, kind: input, shape index: {}]
  %s1 = inlined_call_operand.vmem [shape: bf16[64,4], index: 1, kind: input, shape index: {}]
  %s2 = inlined_call_operand.vmem [shape: bf16[32,64], index: 2, kind: input, shape index: {}]
  %s3 = inlined_call_operand.vmem [shape: bf16[16,32], index: 3, kind: input, shape index: {}]
  %s4 = inlined_call_operand.vmem [shape: bf16[8,16], index: 4, kind: input, shape index: {}]
  %s5 = inlined_call_operand.vmem [shape: f32[64,4], index: 5, kind: input, shape index: {}]
  %s6 = inlined_call_operand.hbm [shape: f32[8,128], index: 6, kind: output, shape index: {}]
  %s7 = sld [smem:[#allocation0]]
  $region34: #{bb84nn_forward_t.1} parent=0
    _
  %s9 = ssub.s32 1, %s7
  %s10 = scalar_select 0, %s9, %s7
  $region1: #{bb84nn_forward_t.1} parent=0
    #allocation2 [shape = 'u8[4096]{0}', space=vmem, size = 0x1000, scoped, tag = 'output window, operand 0, single buffered']
    #allocation3 [shape = 's32[1]{0}', space=sflag, size = 0x4, scoped, tag = 'scoped memory for bb84nn_forward_t.1']
    %11 = vsyncpa [#allocation3], 0
    // Predicated region
    $region2: #{bb84nn_forward_t.1} parent=1 // pred_check
      _
    $region3: #{bb84nn_forward_t.1} parent=1 // pred_check_branch
      %13 = sbr.rel (0) target = $region5
    $region4: #{bb84nn_forward_t.1} parent=1 // pred_region
      _
    $region5: #{bb84nn_forward_t.1} parent=1 // pred_fallthru
      _
    // Predicated region
    $region6: #{bb84nn_forward_t.1} parent=1 // pred_check
      _
    $region7: #{bb84nn_forward_t.1} parent=1 // pred_check_branch
      %15 = sbr.rel (0) target = $region9
    $region8: #{bb84nn_forward_t.1} parent=1 // pred_region
      _
    $region9: #{bb84nn_forward_t.1} parent=1 // pred_fallthru
      _
    // Predicated region
    $region10: #{bb84nn_forward_t.1} parent=1 // pred_check
      _
    $region11: #{bb84nn_forward_t.1} parent=1 // pred_check_branch
      %17 = sbr.rel (0) target = $region13
    $region12: #{bb84nn_forward_t.1} parent=1 // pred_region
      _
    $region13: #{bb84nn_forward_t.1} parent=1 // pred_fallthru
      _
    // Predicated region
    $region14: #{bb84nn_forward_t.1} parent=1 // pred_check
      _
    $region15: #{bb84nn_forward_t.1} parent=1 // pred_check_branch
      %19 = sbr.rel (0) target = $region17
    $region16: #{bb84nn_forward_t.1} parent=1 // pred_region
      _
    $region17: #{bb84nn_forward_t.1} parent=1 // pred_fallthru
      _
    // Predicated region
    $region18: #{bb84nn_forward_t.1} parent=1 // pred_check
      _
    $region19: #{bb84nn_forward_t.1} parent=1 // pred_check_branch
      %21 = sbr.rel (0) target = $region21
    $region20: #{bb84nn_forward_t.1} parent=1 // pred_region
      _
    $region21: #{bb84nn_forward_t.1} parent=1 // pred_fallthru
      _
    // Predicated region
    $region22: #{bb84nn_forward_t.1} parent=1 // pred_check
      _
    $region23: #{bb84nn_forward_t.1} parent=1 // pred_check_branch
      %23 = sbr.rel (0) target = $region25
    $region24: #{bb84nn_forward_t.1} parent=1 // pred_region
      _
    $region25: #{bb84nn_forward_t.1} parent=1 // pred_fallthru
      _
    %v25 = vld [vmem:[%s0] sm:$0xf]
    %v26 = vpack.c.bf16 %v25, %v25
    %v27 = vld [vmem:[%s5] sm:$0xff]
    %v28 = vld [vmem:[%s5 + $0x8] sm:$0xff]
    %v29 = vld [vmem:[%s5 + $0x10] sm:$0xff]
    %v30 = vld [vmem:[%s5 + $0x18] sm:$0xff]
    %v31 = vld [vmem:[%s5 + $0x20] sm:$0xff]
    %v32 = vld [vmem:[%s5 + $0x28] sm:$0xff]
    %v33 = vld [vmem:[%s5 + $0x30] sm:$0xff]
    %v34 = vld [vmem:[%s5 + $0x38] sm:$0xff]
    %v35 = vld [vmem:[%s1] sm:$0xf]
    %v36 = vld [vmem:[%s1 + $0x4] sm:$0xf]
    %v37 = vld [vmem:[%s1 + $0x8] sm:$0xf]
    %v38 = vld [vmem:[%s1 + $0xc] sm:$0xf]
    %v39 = vld [vmem:[%s1 + $0x10] sm:$0xf]
    %v40 = vld [vmem:[%s1 + $0x14] sm:$0xf]
    %v41 = vld [vmem:[%s1 + $0x18] sm:$0xf]
    %v42 = vld [vmem:[%s1 + $0x1c] sm:$0xf]
    %44 = vset.pattern.permute.xlu0 0
    %45 = vperm.xlu0 %44, %v27
    %v46 = vpop.permute.xlu0 %45
    %49 = vset.pattern.permute.xlu0 0
    %50 = vperm.xlu0 %49, %v28
    %v51 = vpop.permute.xlu0 %50
    %54 = vset.pattern.permute.xlu0 0
    %55 = vperm.xlu0 %54, %v29
    %v56 = vpop.permute.xlu0 %55
    %59 = vset.pattern.permute.xlu0 0
    %60 = vperm.xlu0 %59, %v30
    %v61 = vpop.permute.xlu0 %60
    %64 = vset.pattern.permute.xlu0 0
    %65 = vperm.xlu0 %64, %v31
    %v66 = vpop.permute.xlu0 %65
    %69 = vset.pattern.permute.xlu0 0
    %70 = vperm.xlu0 %69, %v32
    %v71 = vpop.permute.xlu0 %70
    %74 = vset.pattern.permute.xlu0 0
    %75 = vperm.xlu0 %74, %v33
    %v76 = vpop.permute.xlu0 %75
    %79 = vset.pattern.permute.xlu0 0
    %80 = vperm.xlu0 %79, %v34
    %v81 = vpop.permute.xlu0 %80
    %v91 = vunpack.c.l.b16 %v35
    %v92 = vunpack.c.l.b16 %v36
    %v93 = vunpack.c.l.b16 %v37
    %v94 = vunpack.c.l.b16 %v38
    %v95 = vunpack.c.l.b16 %v39
    %v96 = vunpack.c.l.b16 %v40
    %v97 = vunpack.c.l.b16 %v41
    %v98 = vunpack.c.l.b16 %v42
    %v99 = vpack.c.b16 %v92, %v91
    %v100 = vpack.c.b16 %v94, %v93
    %v101 = vpack.c.b16 %v96, %v95
    %v102 = vpack.c.b16 %v98, %v97
    %vm103 = vcmask 31744
    %v105 = vsel %vm103, %v99, 0
    %v108 = vsel %vm103, %v100, 0
    %v111 = vsel %vm103, %v101, 0
    %v114 = vsel %vm103, %v102, 0
    %vm116 = vcmask 1041408
    %v118 = vsel %vm116, %v26, 0
    %120 = vmatprep.subr.bf16.mxu0 0
    %121 = vmatpush1.bf16.msra.mxu0 %v118
    %122 = vmatprep.subr.bf16.mxu0 0
    %123 = vmatpush1.bf16.msra.mxu0 0
    %124 = vmatprep.subr.bf16.mxu0 0
    %125 = vmatpush1.bf16.msra.mxu0 0
    %126 = vmatprep.subr.bf16.mxu0 0
    %127 = vmatpush1.bf16.msra.mxu0 0
    %128 = vmatprep.subr.bf16.mxu0 0
    %129 = vmatpush1.bf16.msra.mxu0 0
    %130 = vmatprep.subr.bf16.mxu0 0
    %131 = vmatpush1.bf16.msra.mxu0 0
    %132 = vmatprep.subr.bf16.mxu0 0
    %133 = vmatpush1.bf16.msra.mxu0 0
    %134 = vmatprep.subr.bf16.mxu0 0
    %135 = vmatpush1.bf16.msra.mxu0 0
    %136 = vmatprep.subr.bf16.mxu0 0
    %137 = vmatpush1.bf16.msra.mxu0 0
    %138 = vmatprep.subr.bf16.mxu0 0
    %139 = vmatpush1.bf16.msra.mxu0 0
    %140 = vmatprep.subr.bf16.mxu0 0
    %141 = vmatpush1.bf16.msra.mxu0 0
    %142 = vmatprep.subr.bf16.mxu0 0
    %143 = vmatpush1.bf16.msra.mxu0 0
    %144 = vmatprep.subr.bf16.mxu0 0
    %145 = vmatpush1.bf16.msra.mxu0 0
    %146 = vmatprep.subr.bf16.mxu0 0
    %147 = vmatpush1.bf16.msra.mxu0 0
    %148 = vmatprep.subr.bf16.mxu0 0
    %149 = vmatpush1.bf16.msra.mxu0 0
    %150 = vmatprep.subr.bf16.mxu0 0
    %151 = vmatpush1.bf16.msra.mxu0 0
    %152 = vmatprep.mubr.bf16.mxu0 0
    %153 = vmatmul.mubr.bf16.gmra.mrb[0].mxu0 %v105
    %v154 = vpop.f32.mrb[0].mxu0
    %v155 = vadd.f32 %v46, %v154
    %v156 = vpop.f32.mrb[0].mxu0
    %v157 = vpop.f32.mrb[0].mxu0
    %v158 = vadd.f32 %v51, %v157
    %v159 = vpop.f32.mrb[0].mxu0
    %160 = vmatprep.mubr.bf16.mxu0 0
    %161 = vmatmul.mubr.bf16.gmra.mrb[0].mxu0 %v108
    %v162 = vpop.f32.mrb[0].mxu0
    %v163 = vadd.f32 %v56, %v162
    %v164 = vpop.f32.mrb[0].mxu0
    %v165 = vpop.f32.mrb[0].mxu0
    %v166 = vadd.f32 %v61, %v165
    %v167 = vpop.f32.mrb[0].mxu0
    %168 = vmatprep.mubr.bf16.mxu0 0
    %169 = vmatmul.mubr.bf16.gmra.mrb[0].mxu0 %v111
    %v170 = vpop.f32.mrb[0].mxu0
    %v171 = vadd.f32 %v66, %v170
    %v172 = vpop.f32.mrb[0].mxu0
    %v173 = vpop.f32.mrb[0].mxu0
    %v174 = vadd.f32 %v71, %v173
    %v175 = vpop.f32.mrb[0].mxu0
    %176 = vmatprep.mubr.bf16.mxu0 0
    %177 = vmatmul.mubr.bf16.gmra.mrb[0].mxu0 %v114
    %v178 = vpop.f32.mrb[0].mxu0
    %v179 = vadd.f32 %v76, %v178
    %v180 = vpop.f32.mrb[0].mxu0
    %v181 = vpop.f32.mrb[0].mxu0
    %v182 = vadd.f32 %v81, %v181
    %v183 = vpop.f32.mrb[0].mxu0
    %184 = vdwg.mxu0
    %vm185 = vcmp.gt.f32.partialorder %v155, 0.0
    %vm186 = vcmp.gt.f32.partialorder %v158, 0.0
    %vm187 = vcmp.gt.f32.partialorder %v163, 0.0
    %vm188 = vcmp.gt.f32.partialorder %v166, 0.0
    %vm189 = vcmp.gt.f32.partialorder %v171, 0.0
    %vm190 = vcmp.gt.f32.partialorder %v174, 0.0
    %vm191 = vcmp.gt.f32.partialorder %v179, 0.0
    %vm192 = vcmp.gt.f32.partialorder %v182, 0.0
    %v193 = vmul.f32 %v155, 0.1
    %v194 = vmul.f32 %v158, 0.1
    %v195 = vmul.f32 %v163, 0.1
    %v196 = vmul.f32 %v166, 0.1
    %v197 = vmul.f32 %v171, 0.1
    %v198 = vmul.f32 %v174, 0.1
    %v199 = vmul.f32 %v179, 0.1
    %v200 = vmul.f32 %v182, 0.1
    %v201 = vsel %vm185, %v155, %v193
    %v202 = vsel %vm186, %v158, %v194
    %v203 = vsel %vm187, %v163, %v195
    %v204 = vsel %vm188, %v166, %v196
    %v205 = vsel %vm189, %v171, %v197
    %v206 = vsel %vm190, %v174, %v198
    %v207 = vsel %vm191, %v179, %v199
    %v208 = vsel %vm192, %v182, %v200
    %v209 = vld [vmem:[%s2] sm:$0xf]
    %v210 = vld [vmem:[%s2 + $0x4] sm:$0xf]
    %v211 = vld [vmem:[%s2 + $0x8] sm:$0xf]
    %v212 = vld [vmem:[%s2 + $0xc] sm:$0xf]
    %v213 = vpack.c.bf16 %v202, %v201
    %v214 = vpack.c.bf16 %v204, %v203
    %v215 = vpack.c.bf16 %v206, %v205
    %v216 = vpack.c.bf16 %v208, %v207
    %217 = vset.pattern.permute.xlu0 1
    %218 = vperm.xlu0 %217, %v27
    %v219 = vpop.permute.xlu0 %218
    %221 = vset.pattern.permute.xlu0 1
    %222 = vperm.xlu0 %221, %v28
    %v223 = vpop.permute.xlu0 %222
    %225 = vset.pattern.permute.xlu0 1
    %226 = vperm.xlu0 %225, %v29
    %v227 = vpop.permute.xlu0 %226
    %229 = vset.pattern.permute.xlu0 1
    %230 = vperm.xlu0 %229, %v30
    %v231 = vpop.permute.xlu0 %230
    %v237 = vunpack.c.l.b16 %v209
    %v238 = vunpack.c.l.b16 %v210
    %v239 = vunpack.c.l.b16 %v211
    %v240 = vunpack.c.l.b16 %v212
    %v241 = vpack.c.b16 %v238, %v237
    %v242 = vpack.c.b16 %v240, %v239
    %vm243 = vcmask 523264
    %v245 = vsel %vm243, %v241, 0
    %v248 = vsel %vm243, %v242, 0
    %250 = vmatprep.subr.bf16.mxu0 0
    %251 = vmatpush1.bf16.msra.mxu0 %v213
    %252 = vmatprep.subr.bf16.mxu0 0
    %253 = vmatpush1.bf16.msra.mxu0 %v214
    %254 = vmatprep.subr.bf16.mxu0 0
    %255 = vmatpush1.bf16.msra.mxu0 %v215
    %256 = vmatprep.subr.bf16.mxu0 0
    %257 = vmatpush1.bf16.msra.mxu0 %v216
    %258 = vmatprep.subr.bf16.mxu0 0
    %259 = vmatpush1.bf16.msra.mxu0 0
    %260 = vmatprep.subr.bf16.mxu0 0
    %261 = vmatpush1.bf16.msra.mxu0 0
    %262 = vmatprep.subr.bf16.mxu0 0
    %263 = vmatpush1.bf16.msra.mxu0 0
    %264 = vmatprep.subr.bf16.mxu0 0
    %265 = vmatpush1.bf16.msra.mxu0 0
    %266 = vmatprep.subr.bf16.mxu0 0
    %267 = vmatpush1.bf16.msra.mxu0 0
    %268 = vmatprep.subr.bf16.mxu0 0
    %269 = vmatpush1.bf16.msra.mxu0 0
    %270 = vmatprep.subr.bf16.mxu0 0
    %271 = vmatpush1.bf16.msra.mxu0 0
    %272 = vmatprep.subr.bf16.mxu0 0
    %273 = vmatpush1.bf16.msra.mxu0 0
    %274 = vmatprep.subr.bf16.mxu0 0
    %275 = vmatpush1.bf16.msra.mxu0 0
    %276 = vmatprep.subr.bf16.mxu0 0
    %277 = vmatpush1.bf16.msra.mxu0 0
    %278 = vmatprep.subr.bf16.mxu0 0
    %279 = vmatpush1.bf16.msra.mxu0 0
    %280 = vmatprep.subr.bf16.mxu0 0
    %281 = vmatpush1.bf16.msra.mxu0 0
    %282 = vmatprep.mubr.bf16.mxu0 0
    %283 = vmatmul.mubr.bf16.gmra.mrb[0].mxu0 %v245
    %v284 = vpop.f32.mrb[0].mxu0
    %v285 = vadd.f32 %v219, %v284
    %v286 = vpop.f32.mrb[0].mxu0
    %v287 = vpop.f32.mrb[0].mxu0
    %v288 = vadd.f32 %v223, %v287
    %v289 = vpop.f32.mrb[0].mxu0
    %290 = vmatprep.mubr.bf16.mxu0 0
    %291 = vmatmul.mubr.bf16.gmra.mrb[0].mxu0 %v248
    %v292 = vpop.f32.mrb[0].mxu0
    %v293 = vadd.f32 %v227, %v292
    %v294 = vpop.f32.mrb[0].mxu0
    %v295 = vpop.f32.mrb[0].mxu0
    %v296 = vadd.f32 %v231, %v295
    %v297 = vpop.f32.mrb[0].mxu0
    %298 = vdwg.mxu0
    %vm299 = vcmp.gt.f32.partialorder %v285, 0.0
    %vm300 = vcmp.gt.f32.partialorder %v288, 0.0
    %vm301 = vcmp.gt.f32.partialorder %v293, 0.0
    %vm302 = vcmp.gt.f32.partialorder %v296, 0.0
    %v303 = vmul.f32 %v285, 0.1
    %v304 = vmul.f32 %v288, 0.1
    %v305 = vmul.f32 %v293, 0.1
    %v306 = vmul.f32 %v296, 0.1
    %v307 = vsel %vm299, %v285, %v303
    %v308 = vsel %vm300, %v288, %v304
    %v309 = vsel %vm301, %v293, %v305
    %v310 = vsel %vm302, %v296, %v306
    %v311 = vld [vmem:[%s3] sm:$0xf]
    %v312 = vld [vmem:[%s3 + $0x4] sm:$0xf]
    %v313 = vpack.c.bf16 %v308, %v307
    %v314 = vpack.c.bf16 %v310, %v309
    %315 = vset.pattern.permute.xlu0 2
    %316 = vperm.xlu0 %315, %v27
    %v317 = vpop.permute.xlu0 %316
    %319 = vset.pattern.permute.xlu0 2
    %320 = vperm.xlu0 %319, %v28
    %v321 = vpop.permute.xlu0 %320
    %v325 = vunpack.c.l.b16 %v311
    %v326 = vunpack.c.l.b16 %v312
    %v327 = vpack.c.b16 %v326, %v325
    %vm328 = vcmask 261120
    %v330 = vsel %vm328, %v327, 0
    %332 = vmatprep.subr.bf16.mxu0 0
    %333 = vmatpush1.bf16.msra.mxu0 %v313
    %334 = vmatprep.subr.bf16.mxu0 0
    %335 = vmatpush1.bf16.msra.mxu0 %v314
    %336 = vmatprep.subr.bf16.mxu0 0
    %337 = vmatpush1.bf16.msra.mxu0 0
    %338 = vmatprep.subr.bf16.mxu0 0
    %339 = vmatpush1.bf16.msra.mxu0 0
    %340 = vmatprep.subr.bf16.mxu0 0
    %341 = vmatpush1.bf16.msra.mxu0 0
    %342 = vmatprep.subr.bf16.mxu0 0
    %343 = vmatpush1.bf16.msra.mxu0 0
    %344 = vmatprep.subr.bf16.mxu0 0
    %345 = vmatpush1.bf16.msra.mxu0 0
    %346 = vmatprep.subr.bf16.mxu0 0
    %347 = vmatpush1.bf16.msra.mxu0 0
    %348 = vmatprep.subr.bf16.mxu0 0
    %349 = vmatpush1.bf16.msra.mxu0 0
    %350 = vmatprep.subr.bf16.mxu0 0
    %351 = vmatpush1.bf16.msra.mxu0 0
    %352 = vmatprep.subr.bf16.mxu0 0
    %353 = vmatpush1.bf16.msra.mxu0 0
    %354 = vmatprep.subr.bf16.mxu0 0
    %355 = vmatpush1.bf16.msra.mxu0 0
    %356 = vmatprep.subr.bf16.mxu0 0
    %357 = vmatpush1.bf16.msra.mxu0 0
    %358 = vmatprep.subr.bf16.mxu0 0
    %359 = vmatpush1.bf16.msra.mxu0 0
    %360 = vmatprep.subr.bf16.mxu0 0
    %361 = vmatpush1.bf16.msra.mxu0 0
    %362 = vmatprep.subr.bf16.mxu0 0
    %363 = vmatpush1.bf16.msra.mxu0 0
    %364 = vmatprep.mubr.bf16.mxu0 0
    %365 = vmatmul.mubr.bf16.gmra.mrb[0].mxu0 %v330
    %v366 = vpop.f32.mrb[0].mxu0
    %v367 = vadd.f32 %v317, %v366
    %v368 = vpop.f32.mrb[0].mxu0
    %v369 = vpop.f32.mrb[0].mxu0
    %v370 = vadd.f32 %v321, %v369
    %v371 = vpop.f32.mrb[0].mxu0
    %372 = vdwg.mxu0
    %vm373 = vcmp.gt.f32.partialorder %v367, 0.0
    %vm374 = vcmp.gt.f32.partialorder %v370, 0.0
    %v375 = vmul.f32 %v367, 0.1
    %v376 = vmul.f32 %v370, 0.1
    %v377 = vsel %vm373, %v367, %v375
    %v378 = vsel %vm374, %v370, %v376
    %v379 = vld [vmem:[%s4] sm:$0xf]
    %v380 = vpack.c.bf16 %v378, %v377
    %381 = vset.pattern.permute.xlu0 3
    %382 = vperm.xlu0 %381, %v27
    %v383 = vpop.permute.xlu0 %382
    %vm385 = vcmask 130048
    %v387 = vsel %vm385, %v379, 0
    %389 = vmatprep.subr.bf16.mxu0 0
    %390 = vmatpush1.bf16.msra.mxu0 %v380
    %391 = vmatprep.subr.bf16.mxu0 0
    %392 = vmatpush1.bf16.msra.mxu0 0
    %393 = vmatprep.subr.bf16.mxu0 0
    %394 = vmatpush1.bf16.msra.mxu0 0
    %395 = vmatprep.subr.bf16.mxu0 0
    %396 = vmatpush1.bf16.msra.mxu0 0
    %397 = vmatprep.subr.bf16.mxu0 0
    %398 = vmatpush1.bf16.msra.mxu0 0
    %399 = vmatprep.subr.bf16.mxu0 0
    %400 = vmatpush1.bf16.msra.mxu0 0
    %401 = vmatprep.subr.bf16.mxu0 0
    %402 = vmatpush1.bf16.msra.mxu0 0
    %403 = vmatprep.subr.bf16.mxu0 0
    %404 = vmatpush1.bf16.msra.mxu0 0
    %405 = vmatprep.subr.bf16.mxu0 0
    %406 = vmatpush1.bf16.msra.mxu0 0
    %407 = vmatprep.subr.bf16.mxu0 0
    %408 = vmatpush1.bf16.msra.mxu0 0
    %409 = vmatprep.subr.bf16.mxu0 0
    %410 = vmatpush1.bf16.msra.mxu0 0
    %411 = vmatprep.subr.bf16.mxu0 0
    %412 = vmatpush1.bf16.msra.mxu0 0
    %413 = vmatprep.subr.bf16.mxu0 0
    %414 = vmatpush1.bf16.msra.mxu0 0
    %415 = vmatprep.subr.bf16.mxu0 0
    %416 = vmatpush1.bf16.msra.mxu0 0
    %417 = vmatprep.subr.bf16.mxu0 0
    %418 = vmatpush1.bf16.msra.mxu0 0
    %419 = vmatprep.subr.bf16.mxu0 0
    %420 = vmatpush1.bf16.msra.mxu0 0
    %421 = vmatprep.mubr.bf16.mxu0 0
    %422 = vmatmul.mubr.bf16.gmra.mrb[0].mxu0 %v387
    %v423 = vpop.f32.mrb[0].mxu0
    %v424 = vadd.f32 %v383, %v423
    %v425 = vpop.f32.mrb[0].mxu0
    %v426 = vpop.f32.mrb[0].mxu0
    %v427 = vpop.f32.mrb[0].mxu0
    %428 = vdwg.mxu0
    %429 = vst [vmem:[#allocation2] sm:$0xff] %v424
    // Predicated region
    $region26: #{bb84nn_forward_t.1} parent=1 // pred_check
      _
    $region27: #{bb84nn_forward_t.1} parent=1 // pred_check_branch
      %431 = sbr.rel (0) target = $region29
    $region28: #{bb84nn_forward_t.1} parent=1 // pred_region
      %s433 = ssub.s32 128, 128
      %434 = vsyncadd [#allocation3], %s433
      %s436 = sshll.u32 [#allocation2], 4
      %s437 = int_to_ptr.vmem [resolvable:$true] %s436
      %439 = dma.vmem_to_hbm [thread:$0]  %s437, 128, %s6, [#allocation3]
    $region29: #{bb84nn_forward_t.1} parent=1 // pred_fallthru
      _
    // Predicated region
    $region30: #{bb84nn_forward_t.1} parent=1 // pred_check
      _
    $region31: #{bb84nn_forward_t.1} parent=1 // pred_check_branch
      %441 = sbr.rel (0) target = $region33
    $region32: #{bb84nn_forward_t.1} parent=1 // pred_region
      %442 = dma.done [#allocation3], 128
    $region33: #{bb84nn_forward_t.1} parent=1 // pred_fallthru
      _
    %443 = vsyncpa [#allocation3], 1

</llo_original>
